<compile_context>
chip_gen: v7x
topology: tpu7x:2x2x1
jax: 0.10.0
libtpu: 0.0.40
codegen_flags: <defaults>
</compile_context>

<pallas_src>
import functools

import jax
import jax.numpy as jnp
from jax.experimental import pallas as pl
from jax.experimental.pallas import tpu as pltpu


def _round_up(a: int, b: int) -> int:
    return ((a + b - 1) // b) * b


def robot_net_kernel(params_ref, x_ref, o_ref, *, in_size, hidden_size, out_size):
    # params_ref: SMEM f32[in*hid + hid + hid*out + out]  (w1 | b1 | w2 | b2, PyTorch row-major)
    # x_ref:      VMEM bf16[in_size, TR, 128]   (batch on sublanes x lanes)
    # o_ref:      VMEM f32 [out_size, TR, 128]
    tr = x_ref.shape[1]

    w1_off = 0
    b1_off = in_size * hidden_size
    w2_off = b1_off + hidden_size
    b2_off = w2_off + hidden_size * out_size

    # Scalar weights: read once from SMEM, reused across all chunks (sreg -> vreg splats).
    w1 = [[params_ref[w1_off + j * in_size + k] for k in range(in_size)]
          for j in range(hidden_size)]
    b1 = [params_ref[b1_off + j] for j in range(hidden_size)]
    w2 = [[params_ref[w2_off + o * hidden_size + j] for j in range(hidden_size)]
          for o in range(out_size)]
    b2 = [params_ref[b2_off + o] for o in range(out_size)]

    # Inner chunking: 16 sublane rows (= 2048 batch columns) per step decouples the
    # (large) DMA tile from the compute working set, keeping it well under 64 vregs.
    CH = 16
    for r0 in range(0, tr, CH):
        rows = min(CH, tr - r0)
        x = x_ref[:, r0:r0 + rows, :].astype(jnp.float32)      # (IN, rows, 128) f32 in-register

        # Layer 1 + ReLU: 54 broadcast FMAs + 6 max per chunk (pure VPU).
        h = []
        for j in range(hidden_size):
            acc = w1[j][0] * x[0]
            for k in range(1, in_size):
                acc = acc + w1[j][k] * x[k]
            h.append(jnp.maximum(acc + b1[j], 0.0))

        # Layer 2 + sigmoid; exp/recip land on the EUP slot, store is lane-dense.
        for o in range(out_size):
            y = b2[o] + w2[o][0] * h[0]
            for j in range(1, hidden_size):
                y = y + w2[o][j] * h[j]
            s = pl.reciprocal(1.0 + jnp.exp(-y), approx=True)
            o_ref[o, r0:r0 + rows, :] = s.astype(o_ref.dtype)


def _choose_tile(b_pad: int, tile_cols: int) -> int:
    """Pick a batch-tile width (columns). b_pad is a multiple of 128."""
    if b_pad <= 16384:
        return b_pad                      # single tile; full-extent block is always legal
    # >=2 tiles feeds both v7x TensorCores; up to 8 tiles keeps the pipeline busy while
    # each tile stays >= ~16K columns (so the ~0.35us per-step overhead is amortized).
    n = max(pl.cdiv(b_pad, tile_cols), min(8, b_pad // 16384))
    # Multiple of 2048 => tile//128 is a multiple of 16 (safe for bf16 sublane packing).
    return _round_up(pl.cdiv(b_pad, n), 2048)


def robot_network_forward(x, w1, b1, w2, b2, *, tile_cols=32768, stream_dtype=jnp.bfloat16):
    """x: (B, in). Weights in PyTorch layout: w1 (hid, in), b1 (hid,), w2 (out, hid), b2 (out,)."""
    B, in_size = x.shape
    hidden_size = w1.shape[0]
    out_size = w2.shape[0]

    b_pad = _round_up(B, 128)                 # pad only to 128, not to a tile multiple
    tb = _choose_tile(b_pad, int(tile_cols))
    b_tiled = _round_up(b_pad, tb)            # waste bounded by ~num_tiles * 2048 columns
    num_tiles = b_tiled // tb
    tr = tb // 128

    # One fused XLA pass: transpose to (features, batch) + bf16 downcast + pad.
    # TODO(synk): this is still one extra HBM pass over x; if the producer can hand over
    # x already in (features, batch) layout, feed it to the kernel directly.
    xt = jnp.transpose(x).astype(stream_dtype)                  # (IN, B)
    xt = jnp.pad(xt, ((0, 0), (0, b_tiled - B)))                # (IN, Btiled)
    x3d = xt.reshape(in_size, b_tiled // 128, 128)              # free minor-dim split

    # Single packed parameter slab -> one SMEM-resident input (f32 for exact math).
    params = jnp.concatenate(
        [w1.reshape(-1), b1.reshape(-1), w2.reshape(-1), b2.reshape(-1)]
    ).astype(jnp.float32)

    kernel = functools.partial(
        robot_net_kernel, in_size=in_size, hidden_size=hidden_size, out_size=out_size
    )

    cost = pl.CostEstimate(
        flops=2 * b_tiled * (in_size * hidden_size + hidden_size * out_size),
        transcendentals=2 * b_tiled * out_size,
        bytes_accessed=x3d.size * x3d.dtype.itemsize
        + out_size * b_tiled * 4
        + params.size * 4,
    )

    out3d = pl.pallas_call(
        kernel,
        out_shape=jax.ShapeDtypeStruct((out_size, b_tiled // 128, 128), jnp.float32),
        grid=(num_tiles,),
        in_specs=[
            pl.BlockSpec(memory_space=pltpu.MemorySpace.SMEM),            # packed params slab
            pl.BlockSpec((in_size, tr, 128), lambda i: (0, i, 0)),        # batch tile of x
        ],
        out_specs=pl.BlockSpec((out_size, tr, 128), lambda i: (0, i, 0)),
        compiler_params=pltpu.CompilerParams(
            dimension_semantics=("parallel",),     # shards batch tiles across TCs on v7x
            vmem_limit_bytes=32 * 1024 * 1024,     # double-buffered footprint ~3.5 MiB @ 32K cols
        ),
        cost_estimate=cost,
    )(params, x3d)

    out = out3d.reshape(out_size, b_tiled)[:, :B]   # drop batch padding
    return jnp.transpose(out).astype(x.dtype)       # back to PyTorch (B, out) contract


if __name__ == "__main__":
    key = jax.random.PRNGKey(0)
    k_x, k1, k2, k3, k4 = jax.random.split(key, 5)

    input_size, hidden_size, output_size = 9, 6, 2

    # PyTorch-default-style uniform init, weights in PyTorch (out, in) layout.
    bound1 = 1.0 / float(input_size) ** 0.5
    bound2 = 1.0 / float(hidden_size) ** 0.5
    w1 = jax.random.uniform(k1, (hidden_size, input_size), jnp.float32, -bound1, bound1)
    b1 = jax.random.uniform(k2, (hidden_size,), jnp.float32, -bound1, bound1)
    w2 = jax.random.uniform(k3, (output_size, hidden_size), jnp.float32, -bound2, bound2)
    b2 = jax.random.uniform(k4, (output_size,), jnp.float32, -bound2, bound2)

    def reference(xx):
        xq = xx.astype(jnp.bfloat16).astype(jnp.float32)   # kernel streams x as bf16
        h = jnp.maximum(xq @ w1.T + b1, 0.0)
        return jax.nn.sigmoid(h @ w2.T + b2)

    for B in (8, 300):   # 300 exercises batch padding + a partial sublane chunk
        xb = jax.random.normal(jax.random.fold_in(k_x, B), (B, input_size), jnp.float32)
        out = jax.block_until_ready(robot_network_forward(xb, w1, b1, w2, b2))
        ref = reference(xb)
        assert out.shape == (B, output_size)
        assert bool(jnp.all(jnp.isfinite(out)))
        # bf16 input streaming + EUP approximate reciprocal in the sigmoid -> loose-ish tol.
        assert jnp.allclose(out, ref, atol=1e-2, rtol=1e-2), (
            f"mismatch vs reference at B={B}: "
            f"max|d|={float(jnp.max(jnp.abs(out - ref)))}"
        )

    print("KERNEL_OK")
</pallas_src>

<mosaic_0001>
module attributes {stable_mosaic.version = 11 : i64} {
  func.func @robot_net_kernel(%arg0: i32, %arg1: memref<74xf32, #tpu.memory_space<smem>>, %arg2: memref<9x1x128xbf16, #tpu.memory_space<vmem>>, %arg3: memref<2x1x128xf32, #tpu.memory_space<vmem>>) attributes {dimension_semantics = [#tpu.dimension_semantics<parallel>], iteration_bounds = array<i64: 1>, scalar_prefetch = 0 : i64, scratch_operands = 0 : i64, tpu.core_type = #tpu.core_type<tc>, window_params = [{transform_indices = @transform_0, window_bounds = array<i64: 74>}, {transform_indices = @transform_1, window_bounds = array<i64: 9, 1, 128>}, {transform_indices = @transform_2, window_bounds = array<i64: 2, 1, 128>}]} {
    %c0 = arith.constant 0 : index
    %0 = memref.load %arg1[%c0] : memref<74xf32, #tpu.memory_space<smem>>
    %c1 = arith.constant 1 : index
    %1 = memref.load %arg1[%c1] : memref<74xf32, #tpu.memory_space<smem>>
    %c2 = arith.constant 2 : index
    %2 = memref.load %arg1[%c2] : memref<74xf32, #tpu.memory_space<smem>>
    %c3 = arith.constant 3 : index
    %3 = memref.load %arg1[%c3] : memref<74xf32, #tpu.memory_space<smem>>
    %c4 = arith.constant 4 : index
    %4 = memref.load %arg1[%c4] : memref<74xf32, #tpu.memory_space<smem>>
    %c5 = arith.constant 5 : index
    %5 = memref.load %arg1[%c5] : memref<74xf32, #tpu.memory_space<smem>>
    %c6 = arith.constant 6 : index
    %6 = memref.load %arg1[%c6] : memref<74xf32, #tpu.memory_space<smem>>
    %c7 = arith.constant 7 : index
    %7 = memref.load %arg1[%c7] : memref<74xf32, #tpu.memory_space<smem>>
    %c8 = arith.constant 8 : index
    %8 = memref.load %arg1[%c8] : memref<74xf32, #tpu.memory_space<smem>>
    %c9 = arith.constant 9 : index
    %9 = memref.load %arg1[%c9] : memref<74xf32, #tpu.memory_space<smem>>
    %c10 = arith.constant 10 : index
    %10 = memref.load %arg1[%c10] : memref<74xf32, #tpu.memory_space<smem>>
    %c11 = arith.constant 11 : index
    %11 = memref.load %arg1[%c11] : memref<74xf32, #tpu.memory_space<smem>>
    %c12 = arith.constant 12 : index
    %12 = memref.load %arg1[%c12] : memref<74xf32, #tpu.memory_space<smem>>
    %c13 = arith.constant 13 : index
    %13 = memref.load %arg1[%c13] : memref<74xf32, #tpu.memory_space<smem>>
    %c14 = arith.constant 14 : index
    %14 = memref.load %arg1[%c14] : memref<74xf32, #tpu.memory_space<smem>>
    %c15 = arith.constant 15 : index
    %15 = memref.load %arg1[%c15] : memref<74xf32, #tpu.memory_space<smem>>
    %c16 = arith.constant 16 : index
    %16 = memref.load %arg1[%c16] : memref<74xf32, #tpu.memory_space<smem>>
    %c17 = arith.constant 17 : index
    %17 = memref.load %arg1[%c17] : memref<74xf32, #tpu.memory_space<smem>>
    %c18 = arith.constant 18 : index
    %18 = memref.load %arg1[%c18] : memref<74xf32, #tpu.memory_space<smem>>
    %c19 = arith.constant 19 : index
    %19 = memref.load %arg1[%c19] : memref<74xf32, #tpu.memory_space<smem>>
    %c20 = arith.constant 20 : index
    %20 = memref.load %arg1[%c20] : memref<74xf32, #tpu.memory_space<smem>>
    %c21 = arith.constant 21 : index
    %21 = memref.load %arg1[%c21] : memref<74xf32, #tpu.memory_space<smem>>
    %c22 = arith.constant 22 : index
    %22 = memref.load %arg1[%c22] : memref<74xf32, #tpu.memory_space<smem>>
    %c23 = arith.constant 23 : index
    %23 = memref.load %arg1[%c23] : memref<74xf32, #tpu.memory_space<smem>>
    %c24 = arith.constant 24 : index
    %24 = memref.load %arg1[%c24] : memref<74xf32, #tpu.memory_space<smem>>
    %c25 = arith.constant 25 : index
    %25 = memref.load %arg1[%c25] : memref<74xf32, #tpu.memory_space<smem>>
    %c26 = arith.constant 26 : index
    %26 = memref.load %arg1[%c26] : memref<74xf32, #tpu.memory_space<smem>>
    %c27 = arith.constant 27 : index
    %27 = memref.load %arg1[%c27] : memref<74xf32, #tpu.memory_space<smem>>
    %c28 = arith.constant 28 : index
    %28 = memref.load %arg1[%c28] : memref<74xf32, #tpu.memory_space<smem>>
    %c29 = arith.constant 29 : index
    %29 = memref.load %arg1[%c29] : memref<74xf32, #tpu.memory_space<smem>>
    %c30 = arith.constant 30 : index
    %30 = memref.load %arg1[%c30] : memref<74xf32, #tpu.memory_space<smem>>
    %c31 = arith.constant 31 : index
    %31 = memref.load %arg1[%c31] : memref<74xf32, #tpu.memory_space<smem>>
    %c32 = arith.constant 32 : index
    %32 = memref.load %arg1[%c32] : memref<74xf32, #tpu.memory_space<smem>>
    %c33 = arith.constant 33 : index
    %33 = memref.load %arg1[%c33] : memref<74xf32, #tpu.memory_space<smem>>
    %c34 = arith.constant 34 : index
    %34 = memref.load %arg1[%c34] : memref<74xf32, #tpu.memory_space<smem>>
    %c35 = arith.constant 35 : index
    %35 = memref.load %arg1[%c35] : memref<74xf32, #tpu.memory_space<smem>>
    %c36 = arith.constant 36 : index
    %36 = memref.load %arg1[%c36] : memref<74xf32, #tpu.memory_space<smem>>
    %c37 = arith.constant 37 : index
    %37 = memref.load %arg1[%c37] : memref<74xf32, #tpu.memory_space<smem>>
    %c38 = arith.constant 38 : index
    %38 = memref.load %arg1[%c38] : memref<74xf32, #tpu.memory_space<smem>>
    %c39 = arith.constant 39 : index
    %39 = memref.load %arg1[%c39] : memref<74xf32, #tpu.memory_space<smem>>
    %c40 = arith.constant 40 : index
    %40 = memref.load %arg1[%c40] : memref<74xf32, #tpu.memory_space<smem>>
    %c41 = arith.constant 41 : index
    %41 = memref.load %arg1[%c41] : memref<74xf32, #tpu.memory_space<smem>>
    %c42 = arith.constant 42 : index
    %42 = memref.load %arg1[%c42] : memref<74xf32, #tpu.memory_space<smem>>
    %c43 = arith.constant 43 : index
    %43 = memref.load %arg1[%c43] : memref<74xf32, #tpu.memory_space<smem>>
    %c44 = arith.constant 44 : index
    %44 = memref.load %arg1[%c44] : memref<74xf32, #tpu.memory_space<smem>>
    %c45 = arith.constant 45 : index
    %45 = memref.load %arg1[%c45] : memref<74xf32, #tpu.memory_space<smem>>
    %c46 = arith.constant 46 : index
    %46 = memref.load %arg1[%c46] : memref<74xf32, #tpu.memory_space<smem>>
    %c47 = arith.constant 47 : index
    %47 = memref.load %arg1[%c47] : memref<74xf32, #tpu.memory_space<smem>>
    %c48 = arith.constant 48 : index
    %48 = memref.load %arg1[%c48] : memref<74xf32, #tpu.memory_space<smem>>
    %c49 = arith.constant 49 : index
    %49 = memref.load %arg1[%c49] : memref<74xf32, #tpu.memory_space<smem>>
    %c50 = arith.constant 50 : index
    %50 = memref.load %arg1[%c50] : memref<74xf32, #tpu.memory_space<smem>>
    %c51 = arith.constant 51 : index
    %51 = memref.load %arg1[%c51] : memref<74xf32, #tpu.memory_space<smem>>
    %c52 = arith.constant 52 : index
    %52 = memref.load %arg1[%c52] : memref<74xf32, #tpu.memory_space<smem>>
    %c53 = arith.constant 53 : index
    %53 = memref.load %arg1[%c53] : memref<74xf32, #tpu.memory_space<smem>>
    %c54 = arith.constant 54 : index
    %54 = memref.load %arg1[%c54] : memref<74xf32, #tpu.memory_space<smem>>
    %c55 = arith.constant 55 : index
    %55 = memref.load %arg1[%c55] : memref<74xf32, #tpu.memory_space<smem>>
    %c56 = arith.constant 56 : index
    %56 = memref.load %arg1[%c56] : memref<74xf32, #tpu.memory_space<smem>>
    %c57 = arith.constant 57 : index
    %57 = memref.load %arg1[%c57] : memref<74xf32, #tpu.memory_space<smem>>
    %c58 = arith.constant 58 : index
    %58 = memref.load %arg1[%c58] : memref<74xf32, #tpu.memory_space<smem>>
    %c59 = arith.constant 59 : index
    %59 = memref.load %arg1[%c59] : memref<74xf32, #tpu.memory_space<smem>>
    %c60 = arith.constant 60 : index
    %60 = memref.load %arg1[%c60] : memref<74xf32, #tpu.memory_space<smem>>
    %c61 = arith.constant 61 : index
    %61 = memref.load %arg1[%c61] : memref<74xf32, #tpu.memory_space<smem>>
    %c62 = arith.constant 62 : index
    %62 = memref.load %arg1[%c62] : memref<74xf32, #tpu.memory_space<smem>>
    %c63 = arith.constant 63 : index
    %63 = memref.load %arg1[%c63] : memref<74xf32, #tpu.memory_space<smem>>
    %c64 = arith.constant 64 : index
    %64 = memref.load %arg1[%c64] : memref<74xf32, #tpu.memory_space<smem>>
    %c65 = arith.constant 65 : index
    %65 = memref.load %arg1[%c65] : memref<74xf32, #tpu.memory_space<smem>>
    %c66 = arith.constant 66 : index
    %66 = memref.load %arg1[%c66] : memref<74xf32, #tpu.memory_space<smem>>
    %c67 = arith.constant 67 : index
    %67 = memref.load %arg1[%c67] : memref<74xf32, #tpu.memory_space<smem>>
    %c68 = arith.constant 68 : index
    %68 = memref.load %arg1[%c68] : memref<74xf32, #tpu.memory_space<smem>>
    %c69 = arith.constant 69 : index
    %69 = memref.load %arg1[%c69] : memref<74xf32, #tpu.memory_space<smem>>
    %c70 = arith.constant 70 : index
    %70 = memref.load %arg1[%c70] : memref<74xf32, #tpu.memory_space<smem>>
    %c71 = arith.constant 71 : index
    %71 = memref.load %arg1[%c71] : memref<74xf32, #tpu.memory_space<smem>>
    %c72 = arith.constant 72 : index
    %72 = memref.load %arg1[%c72] : memref<74xf32, #tpu.memory_space<smem>>
    %c73 = arith.constant 73 : index
    %73 = memref.load %arg1[%c73] : memref<74xf32, #tpu.memory_space<smem>>
    %c0_0 = arith.constant 0 : index
    %c0_1 = arith.constant 0 : index
    %c0_2 = arith.constant 0 : index
    %74 = vector.load %arg2[%c0_0, %c0_1, %c0_2] : memref<9x1x128xbf16, #tpu.memory_space<vmem>>, vector<9x1x128xbf16>
    %75 = arith.extf %74 : vector<9x1x128xbf16> to vector<9x1x128xf32>
    %76 = vector.extract_strided_slice %75 {offsets = [0, 0, 0], sizes = [1, 1, 128], strides = [1, 1, 1]} : vector<9x1x128xf32> to vector<1x1x128xf32>
    %77 = vector.shape_cast %76 : vector<1x1x128xf32> to vector<1x128xf32>
    %78 = vector.broadcast %0 : f32 to vector<1x128xf32>
    %79 = arith.mulf %78, %77 : vector<1x128xf32>
    %80 = vector.extract_strided_slice %75 {offsets = [1, 0, 0], sizes = [1, 1, 128], strides = [1, 1, 1]} : vector<9x1x128xf32> to vector<1x1x128xf32>
    %81 = vector.shape_cast %80 : vector<1x1x128xf32> to vector<1x128xf32>
    %82 = vector.broadcast %1 : f32 to vector<1x128xf32>
    %83 = arith.mulf %82, %81 : vector<1x128xf32>
    %84 = arith.addf %79, %83 : vector<1x128xf32>
    %85 = vector.extract_strided_slice %75 {offsets = [2, 0, 0], sizes = [1, 1, 128], strides = [1, 1, 1]} : vector<9x1x128xf32> to vector<1x1x128xf32>
    %86 = vector.shape_cast %85 : vector<1x1x128xf32> to vector<1x128xf32>
    %87 = vector.broadcast %2 : f32 to vector<1x128xf32>
    %88 = arith.mulf %87, %86 : vector<1x128xf32>
    %89 = arith.addf %84, %88 : vector<1x128xf32>
    %90 = vector.extract_strided_slice %75 {offsets = [3, 0, 0], sizes = [1, 1, 128], strides = [1, 1, 1]} : vector<9x1x128xf32> to vector<1x1x128xf32>
    %91 = vector.shape_cast %90 : vector<1x1x128xf32> to vector<1x128xf32>
    %92 = vector.broadcast %3 : f32 to vector<1x128xf32>
    %93 = arith.mulf %92, %91 : vector<1x128xf32>
    %94 = arith.addf %89, %93 : vector<1x128xf32>
    %95 = vector.extract_strided_slice %75 {offsets = [4, 0, 0], sizes = [1, 1, 128], strides = [1, 1, 1]} : vector<9x1x128xf32> to vector<1x1x128xf32>
    %96 = vector.shape_cast %95 : vector<1x1x128xf32> to vector<1x128xf32>
    %97 = vector.broadcast %4 : f32 to vector<1x128xf32>
    %98 = arith.mulf %97, %96 : vector<1x128xf32>
    %99 = arith.addf %94, %98 : vector<1x128xf32>
    %100 = vector.extract_strided_slice %75 {offsets = [5, 0, 0], sizes = [1, 1, 128], strides = [1, 1, 1]} : vector<9x1x128xf32> to vector<1x1x128xf32>
    %101 = vector.shape_cast %100 : vector<1x1x128xf32> to vector<1x128xf32>
    %102 = vector.broadcast %5 : f32 to vector<1x128xf32>
    %103 = arith.mulf %102, %101 : vector<1x128xf32>
    %104 = arith.addf %99, %103 : vector<1x128xf32>
    %105 = vector.extract_strided_slice %75 {offsets = [6, 0, 0], sizes = [1, 1, 128], strides = [1, 1, 1]} : vector<9x1x128xf32> to vector<1x1x128xf32>
    %106 = vector.shape_cast %105 : vector<1x1x128xf32> to vector<1x128xf32>
    %107 = vector.broadcast %6 : f32 to vector<1x128xf32>
    %108 = arith.mulf %107, %106 : vector<1x128xf32>
    %109 = arith.addf %104, %108 : vector<1x128xf32>
    %110 = vector.extract_strided_slice %75 {offsets = [7, 0, 0], sizes = [1, 1, 128], strides = [1, 1, 1]} : vector<9x1x128xf32> to vector<1x1x128xf32>
    %111 = vector.shape_cast %110 : vector<1x1x128xf32> to vector<1x128xf32>
    %112 = vector.broadcast %7 : f32 to vector<1x128xf32>
    %113 = arith.mulf %112, %111 : vector<1x128xf32>
    %114 = arith.addf %109, %113 : vector<1x128xf32>
    %115 = vector.extract_strided_slice %75 {offsets = [8, 0, 0], sizes = [1, 1, 128], strides = [1, 1, 1]} : vector<9x1x128xf32> to vector<1x1x128xf32>
    %116 = vector.shape_cast %115 : vector<1x1x128xf32> to vector<1x128xf32>
    %117 = vector.broadcast %8 : f32 to vector<1x128xf32>
    %118 = arith.mulf %117, %116 : vector<1x128xf32>
    %119 = arith.addf %114, %118 : vector<1x128xf32>
    %120 = vector.broadcast %54 : f32 to vector<1x128xf32>
    %121 = arith.addf %119, %120 : vector<1x128xf32>
    %cst = arith.constant 0.000000e+00 : f32
    %122 = vector.broadcast %cst : f32 to vector<1x128xf32>
    %123 = arith.maximumf %121, %122 : vector<1x128xf32>
    %124 = vector.extract_strided_slice %75 {offsets = [0, 0, 0], sizes = [1, 1, 128], strides = [1, 1, 1]} : vector<9x1x128xf32> to vector<1x1x128xf32>
    %125 = vector.shape_cast %124 : vector<1x1x128xf32> to vector<1x128xf32>
    %126 = vector.broadcast %9 : f32 to vector<1x128xf32>
    %127 = arith.mulf %126, %125 : vector<1x128xf32>
    %128 = vector.extract_strided_slice %75 {offsets = [1, 0, 0], sizes = [1, 1, 128], strides = [1, 1, 1]} : vector<9x1x128xf32> to vector<1x1x128xf32>
    %129 = vector.shape_cast %128 : vector<1x1x128xf32> to vector<1x128xf32>
    %130 = vector.broadcast %10 : f32 to vector<1x128xf32>
    %131 = arith.mulf %130, %129 : vector<1x128xf32>
    %132 = arith.addf %127, %131 : vector<1x128xf32>
    %133 = vector.extract_strided_slice %75 {offsets = [2, 0, 0], sizes = [1, 1, 128], strides = [1, 1, 1]} : vector<9x1x128xf32> to vector<1x1x128xf32>
    %134 = vector.shape_cast %133 : vector<1x1x128xf32> to vector<1x128xf32>
    %135 = vector.broadcast %11 : f32 to vector<1x128xf32>
    %136 = arith.mulf %135, %134 : vector<1x128xf32>
    %137 = arith.addf %132, %136 : vector<1x128xf32>
    %138 = vector.extract_strided_slice %75 {offsets = [3, 0, 0], sizes = [1, 1, 128], strides = [1, 1, 1]} : vector<9x1x128xf32> to vector<1x1x128xf32>
    %139 = vector.shape_cast %138 : vector<1x1x128xf32> to vector<1x128xf32>
    %140 = vector.broadcast %12 : f32 to vector<1x128xf32>
    %141 = arith.mulf %140, %139 : vector<1x128xf32>
    %142 = arith.addf %137, %141 : vector<1x128xf32>
    %143 = vector.extract_strided_slice %75 {offsets = [4, 0, 0], sizes = [1, 1, 128], strides = [1, 1, 1]} : vector<9x1x128xf32> to vector<1x1x128xf32>
    %144 = vector.shape_cast %143 : vector<1x1x128xf32> to vector<1x128xf32>
    %145 = vector.broadcast %13 : f32 to vector<1x128xf32>
    %146 = arith.mulf %145, %144 : vector<1x128xf32>
    %147 = arith.addf %142, %146 : vector<1x128xf32>
    %148 = vector.extract_strided_slice %75 {offsets = [5, 0, 0], sizes = [1, 1, 128], strides = [1, 1, 1]} : vector<9x1x128xf32> to vector<1x1x128xf32>
    %149 = vector.shape_cast %148 : vector<1x1x128xf32> to vector<1x128xf32>
    %150 = vector.broadcast %14 : f32 to vector<1x128xf32>
    %151 = arith.mulf %150, %149 : vector<1x128xf32>
    %152 = arith.addf %147, %151 : vector<1x128xf32>
    %153 = vector.extract_strided_slice %75 {offsets = [6, 0, 0], sizes = [1, 1, 128], strides = [1, 1, 1]} : vector<9x1x128xf32> to vector<1x1x128xf32>
    %154 = vector.shape_cast %153 : vector<1x1x128xf32> to vector<1x128xf32>
    %155 = vector.broadcast %15 : f32 to vector<1x128xf32>
    %156 = arith.mulf %155, %154 : vector<1x128xf32>
    %157 = arith.addf %152, %156 : vector<1x128xf32>
    %158 = vector.extract_strided_slice %75 {offsets = [7, 0, 0], sizes = [1, 1, 128], strides = [1, 1, 1]} : vector<9x1x128xf32> to vector<1x1x128xf32>
    %159 = vector.shape_cast %158 : vector<1x1x128xf32> to vector<1x128xf32>
    %160 = vector.broadcast %16 : f32 to vector<1x128xf32>
    %161 = arith.mulf %160, %159 : vector<1x128xf32>
    %162 = arith.addf %157, %161 : vector<1x128xf32>
    %163 = vector.extract_strided_slice %75 {offsets = [8, 0, 0], sizes = [1, 1, 128], strides = [1, 1, 1]} : vector<9x1x128xf32> to vector<1x1x128xf32>
    %164 = vector.shape_cast %163 : vector<1x1x128xf32> to vector<1x128xf32>
    %165 = vector.broadcast %17 : f32 to vector<1x128xf32>
    %166 = arith.mulf %165, %164 : vector<1x128xf32>
    %167 = arith.addf %162, %166 : vector<1x128xf32>
    %168 = vector.broadcast %55 : f32 to vector<1x128xf32>
    %169 = arith.addf %167, %168 : vector<1x128xf32>
    %cst_3 = arith.constant 0.000000e+00 : f32
    %170 = vector.broadcast %cst_3 : f32 to vector<1x128xf32>
    %171 = arith.maximumf %169, %170 : vector<1x128xf32>
    %172 = vector.extract_strided_slice %75 {offsets = [0, 0, 0], sizes = [1, 1, 128], strides = [1, 1, 1]} : vector<9x1x128xf32> to vector<1x1x128xf32>
    %173 = vector.shape_cast %172 : vector<1x1x128xf32> to vector<1x128xf32>
    %174 = vector.broadcast %18 : f32 to vector<1x128xf32>
    %175 = arith.mulf %174, %173 : vector<1x128xf32>
    %176 = vector.extract_strided_slice %75 {offsets = [1, 0, 0], sizes = [1, 1, 128], strides = [1, 1, 1]} : vector<9x1x128xf32> to vector<1x1x128xf32>
    %177 = vector.shape_cast %176 : vector<1x1x128xf32> to vector<1x128xf32>
    %178 = vector.broadcast %19 : f32 to vector<1x128xf32>
    %179 = arith.mulf %178, %177 : vector<1x128xf32>
    %180 = arith.addf %175, %179 : vector<1x128xf32>
    %181 = vector.extract_strided_slice %75 {offsets = [2, 0, 0], sizes = [1, 1, 128], strides = [1, 1, 1]} : vector<9x1x128xf32> to vector<1x1x128xf32>
    %182 = vector.shape_cast %181 : vector<1x1x128xf32> to vector<1x128xf32>
    %183 = vector.broadcast %20 : f32 to vector<1x128xf32>
    %184 = arith.mulf %183, %182 : vector<1x128xf32>
    %185 = arith.addf %180, %184 : vector<1x128xf32>
    %186 = vector.extract_strided_slice %75 {offsets = [3, 0, 0], sizes = [1, 1, 128], strides = [1, 1, 1]} : vector<9x1x128xf32> to vector<1x1x128xf32>
    %187 = vector.shape_cast %186 : vector<1x1x128xf32> to vector<1x128xf32>
    %188 = vector.broadcast %21 : f32 to vector<1x128xf32>
    %189 = arith.mulf %188, %187 : vector<1x128xf32>
    %190 = arith.addf %185, %189 : vector<1x128xf32>
    %191 = vector.extract_strided_slice %75 {offsets = [4, 0, 0], sizes = [1, 1, 128], strides = [1, 1, 1]} : vector<9x1x128xf32> to vector<1x1x128xf32>
    %192 = vector.shape_cast %191 : vector<1x1x128xf32> to vector<1x128xf32>
    %193 = vector.broadcast %22 : f32 to vector<1x128xf32>
    %194 = arith.mulf %193, %192 : vector<1x128xf32>
    %195 = arith.addf %190, %194 : vector<1x128xf32>
    %196 = vector.extract_strided_slice %75 {offsets = [5, 0, 0], sizes = [1, 1, 128], strides = [1, 1, 1]} : vector<9x1x128xf32> to vector<1x1x128xf32>
    %197 = vector.shape_cast %196 : vector<1x1x128xf32> to vector<1x128xf32>
    %198 = vector.broadcast %23 : f32 to vector<1x128xf32>
    %199 = arith.mulf %198, %197 : vector<1x128xf32>
    %200 = arith.addf %195, %199 : vector<1x128xf32>
    %201 = vector.extract_strided_slice %75 {offsets = [6, 0, 0], sizes = [1, 1, 128], strides = [1, 1, 1]} : vector<9x1x128xf32> to vector<1x1x128xf32>
    %202 = vector.shape_cast %201 : vector<1x1x128xf32> to vector<1x128xf32>
    %203 = vector.broadcast %24 : f32 to vector<1x128xf32>
    %204 = arith.mulf %203, %202 : vector<1x128xf32>
    %205 = arith.addf %200, %204 : vector<1x128xf32>
    %206 = vector.extract_strided_slice %75 {offsets = [7, 0, 0], sizes = [1, 1, 128], strides = [1, 1, 1]} : vector<9x1x128xf32> to vector<1x1x128xf32>
    %207 = vector.shape_cast %206 : vector<1x1x128xf32> to vector<1x128xf32>
    %208 = vector.broadcast %25 : f32 to vector<1x128xf32>
    %209 = arith.mulf %208, %207 : vector<1x128xf32>
    %210 = arith.addf %205, %209 : vector<1x128xf32>
    %211 = vector.extract_strided_slice %75 {offsets = [8, 0, 0], sizes = [1, 1, 128], strides = [1, 1, 1]} : vector<9x1x128xf32> to vector<1x1x128xf32>
    %212 = vector.shape_cast %211 : vector<1x1x128xf32> to vector<1x128xf32>
    %213 = vector.broadcast %26 : f32 to vector<1x128xf32>
    %214 = arith.mulf %213, %212 : vector<1x128xf32>
    %215 = arith.addf %210, %214 : vector<1x128xf32>
    %216 = vector.broadcast %56 : f32 to vector<1x128xf32>
    %217 = arith.addf %215, %216 : vector<1x128xf32>
    %cst_4 = arith.constant 0.000000e+00 : f32
    %218 = vector.broadcast %cst_4 : f32 to vector<1x128xf32>
    %219 = arith.maximumf %217, %218 : vector<1x128xf32>
    %220 = vector.extract_strided_slice %75 {offsets = [0, 0, 0], sizes = [1, 1, 128], strides = [1, 1, 1]} : vector<9x1x128xf32> to vector<1x1x128xf32>
    %221 = vector.shape_cast %220 : vector<1x1x128xf32> to vector<1x128xf32>
    %222 = vector.broadcast %27 : f32 to vector<1x128xf32>
    %223 = arith.mulf %222, %221 : vector<1x128xf32>
    %224 = vector.extract_strided_slice %75 {offsets = [1, 0, 0], sizes = [1, 1, 128], strides = [1, 1, 1]} : vector<9x1x128xf32> to vector<1x1x128xf32>
    %225 = vector.shape_cast %224 : vector<1x1x128xf32> to vector<1x128xf32>
    %226 = vector.broadcast %28 : f32 to vector<1x128xf32>
    %227 = arith.mulf %226, %225 : vector<1x128xf32>
    %228 = arith.addf %223, %227 : vector<1x128xf32>
    %229 = vector.extract_strided_slice %75 {offsets = [2, 0, 0], sizes = [1, 1, 128], strides = [1, 1, 1]} : vector<9x1x128xf32> to vector<1x1x128xf32>
    %230 = vector.shape_cast %229 : vector<1x1x128xf32> to vector<1x128xf32>
    %231 = vector.broadcast %29 : f32 to vector<1x128xf32>
    %232 = arith.mulf %231, %230 : vector<1x128xf32>
    %233 = arith.addf %228, %232 : vector<1x128xf32>
    %234 = vector.extract_strided_slice %75 {offsets = [3, 0, 0], sizes = [1, 1, 128], strides = [1, 1, 1]} : vector<9x1x128xf32> to vector<1x1x128xf32>
    %235 = vector.shape_cast %234 : vector<1x1x128xf32> to vector<1x128xf32>
    %236 = vector.broadcast %30 : f32 to vector<1x128xf32>
    %237 = arith.mulf %236, %235 : vector<1x128xf32>
    %238 = arith.addf %233, %237 : vector<1x128xf32>
    %239 = vector.extract_strided_slice %75 {offsets = [4, 0, 0], sizes = [1, 1, 128], strides = [1, 1, 1]} : vector<9x1x128xf32> to vector<1x1x128xf32>
    %240 = vector.shape_cast %239 : vector<1x1x128xf32> to vector<1x128xf32>
    %241 = vector.broadcast %31 : f32 to vector<1x128xf32>
    %242 = arith.mulf %241, %240 : vector<1x128xf32>
    %243 = arith.addf %238, %242 : vector<1x128xf32>
    %244 = vector.extract_strided_slice %75 {offsets = [5, 0, 0], sizes = [1, 1, 128], strides = [1, 1, 1]} : vector<9x1x128xf32> to vector<1x1x128xf32>
    %245 = vector.shape_cast %244 : vector<1x1x128xf32> to vector<1x128xf32>
    %246 = vector.broadcast %32 : f32 to vector<1x128xf32>
    %247 = arith.mulf %246, %245 : vector<1x128xf32>
    %248 = arith.addf %243, %247 : vector<1x128xf32>
    %249 = vector.extract_strided_slice %75 {offsets = [6, 0, 0], sizes = [1, 1, 128], strides = [1, 1, 1]} : vector<9x1x128xf32> to vector<1x1x128xf32>
    %250 = vector.shape_cast %249 : vector<1x1x128xf32> to vector<1x128xf32>
    %251 = vector.broadcast %33 : f32 to vector<1x128xf32>
    %252 = arith.mulf %251, %250 : vector<1x128xf32>
    %253 = arith.addf %248, %252 : vector<1x128xf32>
    %254 = vector.extract_strided_slice %75 {offsets = [7, 0, 0], sizes = [1, 1, 128], strides = [1, 1, 1]} : vector<9x1x128xf32> to vector<1x1x128xf32>
    %255 = vector.shape_cast %254 : vector<1x1x128xf32> to vector<1x128xf32>
    %256 = vector.broadcast %34 : f32 to vector<1x128xf32>
    %257 = arith.mulf %256, %255 : vector<1x128xf32>
    %258 = arith.addf %253, %257 : vector<1x128xf32>
    %259 = vector.extract_strided_slice %75 {offsets = [8, 0, 0], sizes = [1, 1, 128], strides = [1, 1, 1]} : vector<9x1x128xf32> to vector<1x1x128xf32>
    %260 = vector.shape_cast %259 : vector<1x1x128xf32> to vector<1x128xf32>
    %261 = vector.broadcast %35 : f32 to vector<1x128xf32>
    %262 = arith.mulf %261, %260 : vector<1x128xf32>
    %263 = arith.addf %258, %262 : vector<1x128xf32>
    %264 = vector.broadcast %57 : f32 to vector<1x128xf32>
    %265 = arith.addf %263, %264 : vector<1x128xf32>
    %cst_5 = arith.constant 0.000000e+00 : f32
    %266 = vector.broadcast %cst_5 : f32 to vector<1x128xf32>
    %267 = arith.maximumf %265, %266 : vector<1x128xf32>
    %268 = vector.extract_strided_slice %75 {offsets = [0, 0, 0], sizes = [1, 1, 128], strides = [1, 1, 1]} : vector<9x1x128xf32> to vector<1x1x128xf32>
    %269 = vector.shape_cast %268 : vector<1x1x128xf32> to vector<1x128xf32>
    %270 = vector.broadcast %36 : f32 to vector<1x128xf32>
    %271 = arith.mulf %270, %269 : vector<1x128xf32>
    %272 = vector.extract_strided_slice %75 {offsets = [1, 0, 0], sizes = [1, 1, 128], strides = [1, 1, 1]} : vector<9x1x128xf32> to vector<1x1x128xf32>
    %273 = vector.shape_cast %272 : vector<1x1x128xf32> to vector<1x128xf32>
    %274 = vector.broadcast %37 : f32 to vector<1x128xf32>
    %275 = arith.mulf %274, %273 : vector<1x128xf32>
    %276 = arith.addf %271, %275 : vector<1x128xf32>
    %277 = vector.extract_strided_slice %75 {offsets = [2, 0, 0], sizes = [1, 1, 128], strides = [1, 1, 1]} : vector<9x1x128xf32> to vector<1x1x128xf32>
    %278 = vector.shape_cast %277 : vector<1x1x128xf32> to vector<1x128xf32>
    %279 = vector.broadcast %38 : f32 to vector<1x128xf32>
    %280 = arith.mulf %279, %278 : vector<1x128xf32>
    %281 = arith.addf %276, %280 : vector<1x128xf32>
    %282 = vector.extract_strided_slice %75 {offsets = [3, 0, 0], sizes = [1, 1, 128], strides = [1, 1, 1]} : vector<9x1x128xf32> to vector<1x1x128xf32>
    %283 = vector.shape_cast %282 : vector<1x1x128xf32> to vector<1x128xf32>
    %284 = vector.broadcast %39 : f32 to vector<1x128xf32>
    %285 = arith.mulf %284, %283 : vector<1x128xf32>
    %286 = arith.addf %281, %285 : vector<1x128xf32>
    %287 = vector.extract_strided_slice %75 {offsets = [4, 0, 0], sizes = [1, 1, 128], strides = [1, 1, 1]} : vector<9x1x128xf32> to vector<1x1x128xf32>
    %288 = vector.shape_cast %287 : vector<1x1x128xf32> to vector<1x128xf32>
    %289 = vector.broadcast %40 : f32 to vector<1x128xf32>
    %290 = arith.mulf %289, %288 : vector<1x128xf32>
    %291 = arith.addf %286, %290 : vector<1x128xf32>
    %292 = vector.extract_strided_slice %75 {offsets = [5, 0, 0], sizes = [1, 1, 128], strides = [1, 1, 1]} : vector<9x1x128xf32> to vector<1x1x128xf32>
    %293 = vector.shape_cast %292 : vector<1x1x128xf32> to vector<1x128xf32>
    %294 = vector.broadcast %41 : f32 to vector<1x128xf32>
    %295 = arith.mulf %294, %293 : vector<1x128xf32>
    %296 = arith.addf %291, %295 : vector<1x128xf32>
    %297 = vector.extract_strided_slice %75 {offsets = [6, 0, 0], sizes = [1, 1, 128], strides = [1, 1, 1]} : vector<9x1x128xf32> to vector<1x1x128xf32>
    %298 = vector.shape_cast %297 : vector<1x1x128xf32> to vector<1x128xf32>
    %299 = vector.broadcast %42 : f32 to vector<1x128xf32>
    %300 = arith.mulf %299, %298 : vector<1x128xf32>
    %301 = arith.addf %296, %300 : vector<1x128xf32>
    %302 = vector.extract_strided_slice %75 {offsets = [7, 0, 0], sizes = [1, 1, 128], strides = [1, 1, 1]} : vector<9x1x128xf32> to vector<1x1x128xf32>
    %303 = vector.shape_cast %302 : vector<1x1x128xf32> to vector<1x128xf32>
    %304 = vector.broadcast %43 : f32 to vector<1x128xf32>
    %305 = arith.mulf %304, %303 : vector<1x128xf32>
    %306 = arith.addf %301, %305 : vector<1x128xf32>
    %307 = vector.extract_strided_slice %75 {offsets = [8, 0, 0], sizes = [1, 1, 128], strides = [1, 1, 1]} : vector<9x1x128xf32> to vector<1x1x128xf32>
    %308 = vector.shape_cast %307 : vector<1x1x128xf32> to vector<1x128xf32>
    %309 = vector.broadcast %44 : f32 to vector<1x128xf32>
    %310 = arith.mulf %309, %308 : vector<1x128xf32>
    %311 = arith.addf %306, %310 : vector<1x128xf32>
    %312 = vector.broadcast %58 : f32 to vector<1x128xf32>
    %313 = arith.addf %311, %312 : vector<1x128xf32>
    %cst_6 = arith.constant 0.000000e+00 : f32
    %314 = vector.broadcast %cst_6 : f32 to vector<1x128xf32>
    %315 = arith.maximumf %313, %314 : vector<1x128xf32>
    %316 = vector.extract_strided_slice %75 {offsets = [0, 0, 0], sizes = [1, 1, 128], strides = [1, 1, 1]} : vector<9x1x128xf32> to vector<1x1x128xf32>
    %317 = vector.shape_cast %316 : vector<1x1x128xf32> to vector<1x128xf32>
    %318 = vector.broadcast %45 : f32 to vector<1x128xf32>
    %319 = arith.mulf %318, %317 : vector<1x128xf32>
    %320 = vector.extract_strided_slice %75 {offsets = [1, 0, 0], sizes = [1, 1, 128], strides = [1, 1, 1]} : vector<9x1x128xf32> to vector<1x1x128xf32>
    %321 = vector.shape_cast %320 : vector<1x1x128xf32> to vector<1x128xf32>
    %322 = vector.broadcast %46 : f32 to vector<1x128xf32>
    %323 = arith.mulf %322, %321 : vector<1x128xf32>
    %324 = arith.addf %319, %323 : vector<1x128xf32>
    %325 = vector.extract_strided_slice %75 {offsets = [2, 0, 0], sizes = [1, 1, 128], strides = [1, 1, 1]} : vector<9x1x128xf32> to vector<1x1x128xf32>
    %326 = vector.shape_cast %325 : vector<1x1x128xf32> to vector<1x128xf32>
    %327 = vector.broadcast %47 : f32 to vector<1x128xf32>
    %328 = arith.mulf %327, %326 : vector<1x128xf32>
    %329 = arith.addf %324, %328 : vector<1x128xf32>
    %330 = vector.extract_strided_slice %75 {offsets = [3, 0, 0], sizes = [1, 1, 128], strides = [1, 1, 1]} : vector<9x1x128xf32> to vector<1x1x128xf32>
    %331 = vector.shape_cast %330 : vector<1x1x128xf32> to vector<1x128xf32>
    %332 = vector.broadcast %48 : f32 to vector<1x128xf32>
    %333 = arith.mulf %332, %331 : vector<1x128xf32>
    %334 = arith.addf %329, %333 : vector<1x128xf32>
    %335 = vector.extract_strided_slice %75 {offsets = [4, 0, 0], sizes = [1, 1, 128], strides = [1, 1, 1]} : vector<9x1x128xf32> to vector<1x1x128xf32>
    %336 = vector.shape_cast %335 : vector<1x1x128xf32> to vector<1x128xf32>
    %337 = vector.broadcast %49 : f32 to vector<1x128xf32>
    %338 = arith.mulf %337, %336 : vector<1x128xf32>
    %339 = arith.addf %334, %338 : vector<1x128xf32>
    %340 = vector.extract_strided_slice %75 {offsets = [5, 0, 0], sizes = [1, 1, 128], strides = [1, 1, 1]} : vector<9x1x128xf32> to vector<1x1x128xf32>
    %341 = vector.shape_cast %340 : vector<1x1x128xf32> to vector<1x128xf32>
    %342 = vector.broadcast %50 : f32 to vector<1x128xf32>
    %343 = arith.mulf %342, %341 : vector<1x128xf32>
    %344 = arith.addf %339, %343 : vector<1x128xf32>
    %345 = vector.extract_strided_slice %75 {offsets = [6, 0, 0], sizes = [1, 1, 128], strides = [1, 1, 1]} : vector<9x1x128xf32> to vector<1x1x128xf32>
    %346 = vector.shape_cast %345 : vector<1x1x128xf32> to vector<1x128xf32>
    %347 = vector.broadcast %51 : f32 to vector<1x128xf32>
    %348 = arith.mulf %347, %346 : vector<1x128xf32>
    %349 = arith.addf %344, %348 : vector<1x128xf32>
    %350 = vector.extract_strided_slice %75 {offsets = [7, 0, 0], sizes = [1, 1, 128], strides = [1, 1, 1]} : vector<9x1x128xf32> to vector<1x1x128xf32>
    %351 = vector.shape_cast %350 : vector<1x1x128xf32> to vector<1x128xf32>
    %352 = vector.broadcast %52 : f32 to vector<1x128xf32>
    %353 = arith.mulf %352, %351 : vector<1x128xf32>
    %354 = arith.addf %349, %353 : vector<1x128xf32>
    %355 = vector.extract_strided_slice %75 {offsets = [8, 0, 0], sizes = [1, 1, 128], strides = [1, 1, 1]} : vector<9x1x128xf32> to vector<1x1x128xf32>
    %356 = vector.shape_cast %355 : vector<1x1x128xf32> to vector<1x128xf32>
    %357 = vector.broadcast %53 : f32 to vector<1x128xf32>
    %358 = arith.mulf %357, %356 : vector<1x128xf32>
    %359 = arith.addf %354, %358 : vector<1x128xf32>
    %360 = vector.broadcast %59 : f32 to vector<1x128xf32>
    %361 = arith.addf %359, %360 : vector<1x128xf32>
    %cst_7 = arith.constant 0.000000e+00 : f32
    %362 = vector.broadcast %cst_7 : f32 to vector<1x128xf32>
    %363 = arith.maximumf %361, %362 : vector<1x128xf32>
    %364 = vector.broadcast %60 : f32 to vector<1x128xf32>
    %365 = arith.mulf %364, %123 : vector<1x128xf32>
    %366 = vector.broadcast %72 : f32 to vector<1x128xf32>
    %367 = arith.addf %366, %365 : vector<1x128xf32>
    %368 = vector.broadcast %61 : f32 to vector<1x128xf32>
    %369 = arith.mulf %368, %171 : vector<1x128xf32>
    %370 = arith.addf %367, %369 : vector<1x128xf32>
    %371 = vector.broadcast %62 : f32 to vector<1x128xf32>
    %372 = arith.mulf %371, %219 : vector<1x128xf32>
    %373 = arith.addf %370, %372 : vector<1x128xf32>
    %374 = vector.broadcast %63 : f32 to vector<1x128xf32>
    %375 = arith.mulf %374, %267 : vector<1x128xf32>
    %376 = arith.addf %373, %375 : vector<1x128xf32>
    %377 = vector.broadcast %64 : f32 to vector<1x128xf32>
    %378 = arith.mulf %377, %315 : vector<1x128xf32>
    %379 = arith.addf %376, %378 : vector<1x128xf32>
    %380 = vector.broadcast %65 : f32 to vector<1x128xf32>
    %381 = arith.mulf %380, %363 : vector<1x128xf32>
    %382 = arith.addf %379, %381 : vector<1x128xf32>
    %cst_8 = arith.constant 0.000000e+00 : f32
    %383 = vector.broadcast %cst_8 : f32 to vector<1x128xf32>
    %384 = arith.subf %383, %382 : vector<1x128xf32>
    %385 = math.exp %384 : vector<1x128xf32>
    %cst_9 = arith.constant 1.000000e+00 : f32
    %386 = vector.broadcast %cst_9 : f32 to vector<1x128xf32>
    %387 = arith.addf %386, %385 : vector<1x128xf32>
    %388 = tpu.reciprocal %387 {approx = true} : vector<1x128xf32> -> vector<1x128xf32>
    %c0_10 = arith.constant 0 : index
    %c0_11 = arith.constant 0 : index
    %c0_12 = arith.constant 0 : index
    %389 = vector.load %arg3[%c0_10, %c0_11, %c0_12] : memref<2x1x128xf32, #tpu.memory_space<vmem>>, vector<1x1x128xf32>
    %390 = vector.shape_cast %389 : vector<1x1x128xf32> to vector<1x128xf32>
    %391 = vector.shape_cast %388 : vector<1x128xf32> to vector<1x1x128xf32>
    tpu.vector_store %arg3[%c0_10, %c0_11, %c0_12], %391 {strides = array<i32>} : memref<2x1x128xf32, #tpu.memory_space<vmem>>, vector<1x1x128xf32>,
    %392 = vector.broadcast %66 : f32 to vector<1x128xf32>
    %393 = arith.mulf %392, %123 : vector<1x128xf32>
    %394 = vector.broadcast %73 : f32 to vector<1x128xf32>
    %395 = arith.addf %394, %393 : vector<1x128xf32>
    %396 = vector.broadcast %67 : f32 to vector<1x128xf32>
    %397 = arith.mulf %396, %171 : vector<1x128xf32>
    %398 = arith.addf %395, %397 : vector<1x128xf32>
    %399 = vector.broadcast %68 : f32 to vector<1x128xf32>
    %400 = arith.mulf %399, %219 : vector<1x128xf32>
    %401 = arith.addf %398, %400 : vector<1x128xf32>
    %402 = vector.broadcast %69 : f32 to vector<1x128xf32>
    %403 = arith.mulf %402, %267 : vector<1x128xf32>
    %404 = arith.addf %401, %403 : vector<1x128xf32>
    %405 = vector.broadcast %70 : f32 to vector<1x128xf32>
    %406 = arith.mulf %405, %315 : vector<1x128xf32>
    %407 = arith.addf %404, %406 : vector<1x128xf32>
    %408 = vector.broadcast %71 : f32 to vector<1x128xf32>
    %409 = arith.mulf %408, %363 : vector<1x128xf32>
    %410 = arith.addf %407, %409 : vector<1x128xf32>
    %cst_13 = arith.constant 0.000000e+00 : f32
    %411 = vector.broadcast %cst_13 : f32 to vector<1x128xf32>
    %412 = arith.subf %411, %410 : vector<1x128xf32>
    %413 = math.exp %412 : vector<1x128xf32>
    %cst_14 = arith.constant 1.000000e+00 : f32
    %414 = vector.broadcast %cst_14 : f32 to vector<1x128xf32>
    %415 = arith.addf %414, %413 : vector<1x128xf32>
    %416 = tpu.reciprocal %415 {approx = true} : vector<1x128xf32> -> vector<1x128xf32>
    %c1_15 = arith.constant 1 : index
    %c0_16 = arith.constant 0 : index
    %c0_17 = arith.constant 0 : index
    %417 = vector.load %arg3[%c1_15, %c0_16, %c0_17] : memref<2x1x128xf32, #tpu.memory_space<vmem>>, vector<1x1x128xf32>
    %418 = vector.shape_cast %417 : vector<1x1x128xf32> to vector<1x128xf32>
    %419 = vector.shape_cast %416 : vector<1x128xf32> to vector<1x1x128xf32>
    tpu.vector_store %arg3[%c1_15, %c0_16, %c0_17], %419 {strides = array<i32>} : memref<2x1x128xf32, #tpu.memory_space<vmem>>, vector<1x1x128xf32>,
    return
  }
  func.func @transform_0(%arg0: i32) -> i32 {
    %c0_i32 = arith.constant 0 : i32
    %c0_i32_0 = arith.constant 0 : i32
    return %c0_i32 : i32
  }
  func.func @transform_1(%arg0: i32) -> (i32, i32, i32) {
    %c0_i32 = arith.constant 0 : i32
    %c0_i32_0 = arith.constant 0 : i32
    %c0_i32_1 = arith.constant 0 : i32
    return %c0_i32, %arg0, %c0_i32_0 : i32, i32, i32
  }
  func.func @transform_2(%arg0: i32) -> (i32, i32, i32) {
    %c0_i32 = arith.constant 0 : i32
    %c0_i32_0 = arith.constant 0 : i32
    %c0_i32_1 = arith.constant 0 : i32
    return %c0_i32, %arg0, %c0_i32_0 : i32, i32, i32
  }
}

</mosaic_0001>

<llo_original>
// kernel: tpu_custom_call.1
$region0: #{tpu_custom_call.1}
  #allocation0 [shape = 'u32[]', space=smem, size = 0x4, offset = 0x4, fixed_abs, tag = 'smem constant byte address 0x4 - core index']
  #allocation1 [shape = 'u32[144,128]{1,0:T(1,128)}', space=vmem, size = 0x12000, scoped, tag = 'internal scratch']
  %s0 = inlined_call_operand.vmem [shape: f32[74], index: 0, kind: input, shape index: {}]
  %s1 = inlined_call_operand.vmem [shape: bf16[9,1,128], index: 1, kind: input, shape index: {}]
  %s2 = inlined_call_operand.hbm [shape: f32[2,1,128], index: 2, kind: output, shape index: {}]
  %s3 = sld [smem:[#allocation0]]
  $region22: #{tpu_custom_call.1} parent=0
    _
  %s5 = ssub.s32 1, %s3
  %s6 = scalar_select 0, %s5, %s3
  $region1: #{tpu_custom_call.1} parent=0
    #allocation2 [shape = 'u8[512]{0}', space=smem, size = 0x200, scoped, tag = 'input window, operand 0, single buffered']
    #allocation3 [shape = 's32[1]{0}', space=sflag, size = 0x4, scoped, tag = 'scoped memory for tpu_custom_call.1']
    #allocation4 [shape = 's32[1]{0}', space=sflag, size = 0x4, scoped, tag = 'scoped memory for tpu_custom_call.1']
    #allocation5 [shape = 'u8[1024]{0}', space=vmem, size = 0x400, scoped, tag = 'output window, operand 0, single buffered']
    %7 = vsyncpa [#allocation4], 0
    %8 = vsyncpa [#allocation3], 0
    // Predicated region
    $region2: #{tpu_custom_call.1} parent=1 // pred_check
      _
    $region3: #{tpu_custom_call.1} parent=1 // pred_check_branch
      %10 = sbr.rel (0) target = $region5
    $region4: #{tpu_custom_call.1} parent=1 // pred_region
      %s12 = ssub.s32 16, 16
      %13 = vsyncadd [#allocation4], %s12
      %s15 = sshll.u32 %s0, 4
      %s16 = int_to_ptr.vmem [resolvable:$true] %s15
      %18 = dma.vmem_to_smem %s16, 16, [#allocation2], [#allocation4]
    $region5: #{tpu_custom_call.1} parent=1 // pred_fallthru
      _
    // Predicated region
    $region6: #{tpu_custom_call.1} parent=1 // pred_check
      _
    $region7: #{tpu_custom_call.1} parent=1 // pred_check_branch
      %20 = sbr.rel (0) target = $region9
    $region8: #{tpu_custom_call.1} parent=1 // pred_region
      _
    $region9: #{tpu_custom_call.1} parent=1 // pred_fallthru
      _
    // Predicated region
    $region10: #{tpu_custom_call.1} parent=1 // pred_check
      _
    $region11: #{tpu_custom_call.1} parent=1 // pred_check_branch
      %22 = sbr.rel (0) target = $region13
    $region12: #{tpu_custom_call.1} parent=1 // pred_region
      %23 = dma.done [#allocation4], 16
    $region13: #{tpu_custom_call.1} parent=1 // pred_fallthru
      _
    %24 = sfence
    %s25 = sld [smem:[#allocation2]]
    %s26 = sld [smem:[#allocation2 + $0x1]]
    %s27 = sld [smem:[#allocation2 + $0x2]]
    %s28 = sld [smem:[#allocation2 + $0x3]]
    %s29 = sld [smem:[#allocation2 + $0x4]]
    %s30 = sld [smem:[#allocation2 + $0x5]]
    %s31 = sld [smem:[#allocation2 + $0x6]]
    %s32 = sld [smem:[#allocation2 + $0x7]]
    %s33 = sld [smem:[#allocation2 + $0x8]]
    %s34 = sld [smem:[#allocation2 + $0x9]]
    %s35 = sld [smem:[#allocation2 + $0xa]]
    %s36 = sld [smem:[#allocation2 + $0xb]]
    %s37 = sld [smem:[#allocation2 + $0xc]]
    %s38 = sld [smem:[#allocation2 + $0xd]]
    %s39 = sld [smem:[#allocation2 + $0xe]]
    %s40 = sld [smem:[#allocation2 + $0xf]]
    %s41 = sld [smem:[#allocation2 + $0x10]]
    %s42 = sld [smem:[#allocation2 + $0x11]]
    %s43 = sld [smem:[#allocation2 + $0x12]]
    %s44 = sld [smem:[#allocation2 + $0x13]]
    %s45 = sld [smem:[#allocation2 + $0x14]]
    %s46 = sld [smem:[#allocation2 + $0x15]]
    %s47 = sld [smem:[#allocation2 + $0x16]]
    %s48 = sld [smem:[#allocation2 + $0x17]]
    %s49 = sld [smem:[#allocation2 + $0x18]]
    %s50 = sld [smem:[#allocation2 + $0x19]]
    %s51 = sld [smem:[#allocation2 + $0x1a]]
    %s52 = sld [smem:[#allocation2 + $0x1b]]
    %s53 = sld [smem:[#allocation2 + $0x1c]]
    %s54 = sld [smem:[#allocation2 + $0x1d]]
    %s55 = sld [smem:[#allocation2 + $0x1e]]
    %s56 = sld [smem:[#allocation2 + $0x1f]]
    %s57 = sld [smem:[#allocation2 + $0x20]]
    %s58 = sld [smem:[#allocation2 + $0x21]]
    %s59 = sld [smem:[#allocation2 + $0x22]]
    %s60 = sld [smem:[#allocation2 + $0x23]]
    %s61 = sld [smem:[#allocation2 + $0x24]]
    %s62 = sld [smem:[#allocation2 + $0x25]]
    %s63 = sld [smem:[#allocation2 + $0x26]]
    %s64 = sld [smem:[#allocation2 + $0x27]]
    %s65 = sld [smem:[#allocation2 + $0x28]]
    %s66 = sld [smem:[#allocation2 + $0x29]]
    %s67 = sld [smem:[#allocation2 + $0x2a]]
    %s68 = sld [smem:[#allocation2 + $0x2b]]
    %s69 = sld [smem:[#allocation2 + $0x2c]]
    %s70 = sld [smem:[#allocation2 + $0x2d]]
    %s71 = sld [smem:[#allocation2 + $0x2e]]
    %s72 = sld [smem:[#allocation2 + $0x2f]]
    %s73 = sld [smem:[#allocation2 + $0x30]]
    %s74 = sld [smem:[#allocation2 + $0x31]]
    %s75 = sld [smem:[#allocation2 + $0x32]]
    %s76 = sld [smem:[#allocation2 + $0x33]]
    %s77 = sld [smem:[#allocation2 + $0x34]]
    %s78 = sld [smem:[#allocation2 + $0x35]]
    %s79 = sld [smem:[#allocation2 + $0x36]]
    %s80 = sld [smem:[#allocation2 + $0x37]]
    %s81 = sld [smem:[#allocation2 + $0x38]]
    %s82 = sld [smem:[#allocation2 + $0x39]]
    %s83 = sld [smem:[#allocation2 + $0x3a]]
    %s84 = sld [smem:[#allocation2 + $0x3b]]
    %s85 = sld [smem:[#allocation2 + $0x3c]]
    %s86 = sld [smem:[#allocation2 + $0x3d]]
    %s87 = sld [smem:[#allocation2 + $0x3e]]
    %s88 = sld [smem:[#allocation2 + $0x3f]]
    %s89 = sld [smem:[#allocation2 + $0x40]]
    %s90 = sld [smem:[#allocation2 + $0x41]]
    %s91 = sld [smem:[#allocation2 + $0x42]]
    %s92 = sld [smem:[#allocation2 + $0x43]]
    %s93 = sld [smem:[#allocation2 + $0x44]]
    %s94 = sld [smem:[#allocation2 + $0x45]]
    %s95 = sld [smem:[#allocation2 + $0x46]]
    %s96 = sld [smem:[#allocation2 + $0x47]]
    %s97 = sld [smem:[#allocation2 + $0x48]]
    %s98 = sld [smem:[#allocation2 + $0x49]]
    %v99 = vld [vmem:[%s1] sm:$0x1]
    %v100 = vld [vmem:[%s1 + $0x1] sm:$0x1]
    %v101 = vld [vmem:[%s1 + $0x2] sm:$0x1]
    %v102 = vld [vmem:[%s1 + $0x3] sm:$0x1]
    %v103 = vld [vmem:[%s1 + $0x4] sm:$0x1]
    %v104 = vld [vmem:[%s1 + $0x5] sm:$0x1]
    %v105 = vld [vmem:[%s1 + $0x6] sm:$0x1]
    %v106 = vld [vmem:[%s1 + $0x7] sm:$0x1]
    %v107 = vld [vmem:[%s1 + $0x8] sm:$0x1]
    %v108 = vunpack.c.l.bf16 %v99
    %v109 = vunpack.c.l.bf16 %v100
    %v110 = vunpack.c.l.bf16 %v101
    %v111 = vunpack.c.l.bf16 %v102
    %v112 = vunpack.c.l.bf16 %v103
    %v113 = vunpack.c.l.bf16 %v104
    %v114 = vunpack.c.l.bf16 %v105
    %v115 = vunpack.c.l.bf16 %v106
    %v116 = vunpack.c.l.bf16 %v107
    %v117 = vstv %s25
    %v118 = vmul.f32 %v117, %v108
    %v119 = vstv %s26
    %v120 = vmul.f32 %v119, %v109
    %v121 = vadd.f32 %v118, %v120
    %v122 = vstv %s27
    %v123 = vmul.f32 %v122, %v110
    %v124 = vadd.f32 %v121, %v123
    %v125 = vstv %s28
    %v126 = vmul.f32 %v125, %v111
    %v127 = vadd.f32 %v124, %v126
    %v128 = vstv %s29
    %v129 = vmul.f32 %v128, %v112
    %v130 = vadd.f32 %v127, %v129
    %v131 = vstv %s30
    %v132 = vmul.f32 %v131, %v113
    %v133 = vadd.f32 %v130, %v132
    %v134 = vstv %s31
    %v135 = vmul.f32 %v134, %v114
    %v136 = vadd.f32 %v133, %v135
    %v137 = vstv %s32
    %v138 = vmul.f32 %v137, %v115
    %v139 = vadd.f32 %v136, %v138
    %v140 = vstv %s33
    %v141 = vmul.f32 %v140, %v116
    %v142 = vadd.f32 %v139, %v141
    %v143 = vstv %s79
    %v144 = vadd.f32 %v142, %v143
    %v145 = vmax.f32 %v144, 0.0
    %v146 = vstv %s34
    %v147 = vmul.f32 %v146, %v108
    %v148 = vstv %s35
    %v149 = vmul.f32 %v148, %v109
    %v150 = vadd.f32 %v147, %v149
    %v151 = vstv %s36
    %v152 = vmul.f32 %v151, %v110
    %v153 = vadd.f32 %v150, %v152
    %v154 = vstv %s37
    %v155 = vmul.f32 %v154, %v111
    %v156 = vadd.f32 %v153, %v155
    %v157 = vstv %s38
    %v158 = vmul.f32 %v157, %v112
    %v159 = vadd.f32 %v156, %v158
    %v160 = vstv %s39
    %v161 = vmul.f32 %v160, %v113
    %v162 = vadd.f32 %v159, %v161
    %v163 = vstv %s40
    %v164 = vmul.f32 %v163, %v114
    %v165 = vadd.f32 %v162, %v164
    %v166 = vstv %s41
    %v167 = vmul.f32 %v166, %v115
    %v168 = vadd.f32 %v165, %v167
    %v169 = vstv %s42
    %v170 = vmul.f32 %v169, %v116
    %v171 = vadd.f32 %v168, %v170
    %v172 = vstv %s80
    %v173 = vadd.f32 %v171, %v172
    %v174 = vmax.f32 %v173, 0.0
    %v175 = vstv %s43
    %v176 = vmul.f32 %v175, %v108
    %v177 = vstv %s44
    %v178 = vmul.f32 %v177, %v109
    %v179 = vadd.f32 %v176, %v178
    %v180 = vstv %s45
    %v181 = vmul.f32 %v180, %v110
    %v182 = vadd.f32 %v179, %v181
    %v183 = vstv %s46
    %v184 = vmul.f32 %v183, %v111
    %v185 = vadd.f32 %v182, %v184
    %v186 = vstv %s47
    %v187 = vmul.f32 %v186, %v112
    %v188 = vadd.f32 %v185, %v187
    %v189 = vstv %s48
    %v190 = vmul.f32 %v189, %v113
    %v191 = vadd.f32 %v188, %v190
    %v192 = vstv %s49
    %v193 = vmul.f32 %v192, %v114
    %v194 = vadd.f32 %v191, %v193
    %v195 = vstv %s50
    %v196 = vmul.f32 %v195, %v115
    %v197 = vadd.f32 %v194, %v196
    %v198 = vstv %s51
    %v199 = vmul.f32 %v198, %v116
    %v200 = vadd.f32 %v197, %v199
    %v201 = vstv %s81
    %v202 = vadd.f32 %v200, %v201
    %v203 = vmax.f32 %v202, 0.0
    %v204 = vstv %s52
    %v205 = vmul.f32 %v204, %v108
    %v206 = vstv %s53
    %v207 = vmul.f32 %v206, %v109
    %v208 = vadd.f32 %v205, %v207
    %v209 = vstv %s54
    %v210 = vmul.f32 %v209, %v110
    %v211 = vadd.f32 %v208, %v210
    %v212 = vstv %s55
    %v213 = vmul.f32 %v212, %v111
    %v214 = vadd.f32 %v211, %v213
    %v215 = vstv %s56
    %v216 = vmul.f32 %v215, %v112
    %v217 = vadd.f32 %v214, %v216
    %v218 = vstv %s57
    %v219 = vmul.f32 %v218, %v113
    %v220 = vadd.f32 %v217, %v219
    %v221 = vstv %s58
    %v222 = vmul.f32 %v221, %v114
    %v223 = vadd.f32 %v220, %v222
    %v224 = vstv %s59
    %v225 = vmul.f32 %v224, %v115
    %v226 = vadd.f32 %v223, %v225
    %v227 = vstv %s60
    %v228 = vmul.f32 %v227, %v116
    %v229 = vadd.f32 %v226, %v228
    %v230 = vstv %s82
    %v231 = vadd.f32 %v229, %v230
    %v232 = vmax.f32 %v231, 0.0
    %v233 = vstv %s61
    %v234 = vmul.f32 %v233, %v108
    %v235 = vstv %s62
    %v236 = vmul.f32 %v235, %v109
    %v237 = vadd.f32 %v234, %v236
    %v238 = vstv %s63
    %v239 = vmul.f32 %v238, %v110
    %v240 = vadd.f32 %v237, %v239
    %v241 = vstv %s64
    %v242 = vmul.f32 %v241, %v111
    %v243 = vadd.f32 %v240, %v242
    %v244 = vstv %s65
    %v245 = vmul.f32 %v244, %v112
    %v246 = vadd.f32 %v243, %v245
    %v247 = vstv %s66
    %v248 = vmul.f32 %v247, %v113
    %v249 = vadd.f32 %v246, %v248
    %v250 = vstv %s67
    %v251 = vmul.f32 %v250, %v114
    %v252 = vadd.f32 %v249, %v251
    %v253 = vstv %s68
    %v254 = vmul.f32 %v253, %v115
    %v255 = vadd.f32 %v252, %v254
    %v256 = vstv %s69
    %v257 = vmul.f32 %v256, %v116
    %v258 = vadd.f32 %v255, %v257
    %v259 = vstv %s83
    %v260 = vadd.f32 %v258, %v259
    %v261 = vmax.f32 %v260, 0.0
    %v262 = vstv %s70
    %v263 = vmul.f32 %v262, %v108
    %v264 = vstv %s71
    %v265 = vmul.f32 %v264, %v109
    %v266 = vadd.f32 %v263, %v265
    %v267 = vstv %s72
    %v268 = vmul.f32 %v267, %v110
    %v269 = vadd.f32 %v266, %v268
    %v270 = vstv %s73
    %v271 = vmul.f32 %v270, %v111
    %v272 = vadd.f32 %v269, %v271
    %v273 = vstv %s74
    %v274 = vmul.f32 %v273, %v112
    %v275 = vadd.f32 %v272, %v274
    %v276 = vstv %s75
    %v277 = vmul.f32 %v276, %v113
    %v278 = vadd.f32 %v275, %v277
    %v279 = vstv %s76
    %v280 = vmul.f32 %v279, %v114
    %v281 = vadd.f32 %v278, %v280
    %v282 = vstv %s77
    %v283 = vmul.f32 %v282, %v115
    %v284 = vadd.f32 %v281, %v283
    %v285 = vstv %s78
    %v286 = vmul.f32 %v285, %v116
    %v287 = vadd.f32 %v284, %v286
    %v288 = vstv %s84
    %v289 = vadd.f32 %v287, %v288
    %v290 = vmax.f32 %v289, 0.0
    %v291 = vstv %s85
    %v292 = vmul.f32 %v291, %v145
    %v293 = vstv %s97
    %v294 = vadd.f32 %v293, %v292
    %v295 = vstv %s86
    %v296 = vmul.f32 %v295, %v174
    %v297 = vadd.f32 %v294, %v296
    %v298 = vstv %s87
    %v299 = vmul.f32 %v298, %v203
    %v300 = vadd.f32 %v297, %v299
    %v301 = vstv %s88
    %v302 = vmul.f32 %v301, %v232
    %v303 = vadd.f32 %v300, %v302
    %v304 = vstv %s89
    %v305 = vmul.f32 %v304, %v261
    %v306 = vadd.f32 %v303, %v305
    %v307 = vstv %s90
    %v308 = vmul.f32 %v307, %v290
    %v309 = vadd.f32 %v306, %v308
    %v310 = vsub.f32 0.0, %v309
    %v311 = vmul.f32 %v310, 1.442695
    %v312 = vpow.pop %v311
    %v313 = vadd.f32 %v312, 1.0
    %v314 = vrcp.pop %v313
    %315 = vst [vmem:[#allocation5] sm:$0x1] %v314
    %v316 = vstv %s91
    %v317 = vmul.f32 %v316, %v145
    %v318 = vstv %s98
    %v319 = vadd.f32 %v318, %v317
    %v320 = vstv %s92
    %v321 = vmul.f32 %v320, %v174
    %v322 = vadd.f32 %v319, %v321
    %v323 = vstv %s93
    %v324 = vmul.f32 %v323, %v203
    %v325 = vadd.f32 %v322, %v324
    %v326 = vstv %s94
    %v327 = vmul.f32 %v326, %v232
    %v328 = vadd.f32 %v325, %v327
    %v329 = vstv %s95
    %v330 = vmul.f32 %v329, %v261
    %v331 = vadd.f32 %v328, %v330
    %v332 = vstv %s96
    %v333 = vmul.f32 %v332, %v290
    %v334 = vadd.f32 %v331, %v333
    %v335 = vsub.f32 0.0, %v334
    %v336 = vmul.f32 %v335, 1.442695
    %v337 = vpow.pop %v336
    %v338 = vadd.f32 %v337, 1.0
    %v339 = vrcp.pop %v338
    %s340 = scalar_lea.vmem [#allocation5], 1
    %341 = vst [vmem:[%s340] sm:$0x1] %v339
    // Predicated region
    $region14: #{tpu_custom_call.1} parent=1 // pred_check
      _
    $region15: #{tpu_custom_call.1} parent=1 // pred_check_branch
      %343 = sbr.rel (0) target = $region17
    $region16: #{tpu_custom_call.1} parent=1 // pred_region
      %s345 = ssub.s32 32, 32
      %346 = vsyncadd [#allocation3], %s345
      %s347 = sshll.u32 [#allocation5], 4
      %s348 = int_to_ptr.vmem [resolvable:$true] %s347
      %353 = dma.vmem_to_hbm [thread:$0]  %s348, 32, %s2, [#allocation3], 16, 16, 1
    $region17: #{tpu_custom_call.1} parent=1 // pred_fallthru
      _
    // Predicated region
    $region18: #{tpu_custom_call.1} parent=1 // pred_check
      _
    $region19: #{tpu_custom_call.1} parent=1 // pred_check_branch
      %355 = sbr.rel (0) target = $region21
    $region20: #{tpu_custom_call.1} parent=1 // pred_region
      %356 = dma.done [#allocation3], 32
    $region21: #{tpu_custom_call.1} parent=1 // pred_fallthru
      _
    %357 = vsyncpa [#allocation3], 1
    %358 = vsyncpa [#allocation4], 1

</llo_original>
